<compile_context>
chip_gen: v6e
topology: v6e:2x2x1
jax: 0.10.0
libtpu: 0.0.40
codegen_flags: <defaults>
</compile_context>

<pallas_src>
import jax
import jax.numpy as jnp
import numpy as np
from jax import lax
from jax.experimental import pallas as pl
from jax.experimental.pallas import tpu as pltpu


MXU_DTYPE = jnp.bfloat16   # MXU-native on v5e/v6e/v7x; elementwise math stays f32


# ----------------------------------------------------------------------------
# Pallas kernel: entire FCMul forward pass for one batch tile
# ----------------------------------------------------------------------------
def fcmul_kernel(dlo_ref, act_ref, prm_ref, w1d_ref, w1a_ref, w1p_ref,
                 w2_ref, sq_ref, wq3_ref, bias_ref, out_ref):
    N = sq_ref.shape[-1]          # hidden dim
    F = out_ref.shape[-1]         # n_pts * pts_dim

    def dot(x, w):
        # cast activations to the MXU dtype of the (pre-cast) weights, f32 accumulate
        return jnp.dot(x.astype(w.dtype), w, preferred_element_type=jnp.float32)

    relu = lambda z: jnp.maximum(z, 0.0)

    dlo = dlo_ref[...].astype(jnp.float32)        # (TB, F)  residual source
    act = act_ref[...].astype(jnp.float32)        # (TB, 4)
    prm = prm_ref[...].astype(jnp.float32)        # (TB, 3)

    # ---- fused first layer ----------------------------------------------------
    # W1D/W1A/W1P are zero everywhere except their own N-wide column block, so the
    # sum of the three partial matmuls == concat([dlo@wd1, act@wa1, prm@wp1], -1).
    z1 = (dot(dlo, w1d_ref[...])
          + dot(act, w1a_ref[...])
          + dot(prm, w1p_ref[...])
          + bias_ref[0:1, :3 * N])
    lane = lax.broadcasted_iota(jnp.int32, z1.shape, 1)
    h1 = jnp.where(lane < 2 * N, relu(z1), jnp.tanh(z1))   # relu on dlo/act, tanh on param

    # ---- fused second layer: blockdiag(wd2, wa2, wp2), bias row 1 --------------
    z2 = dot(h1, w2_ref[...]) + bias_ref[1:2, :3 * N]
    h2 = jnp.where(lane < 2 * N, relu(z2), jnp.tanh(z2))

    h_s = h2[:, 0:N]          # dlo branch (after 2 of 3 layers)
    x_a = h2[:, N:2 * N]      # act branch output
    x_p = h2[:, 2 * N:3 * N]  # param branch output (multiplicative gate)

    # ---- dlo branch third layer -------------------------------------------------
    x_s = relu(dot(h_s, sq_ref[0]) + bias_ref[2:3, :N])

    # ---- state_action: Linear(2N, N) on concat([x_s, x_a]) via split weight -----
    x = relu(dot(x_s, sq_ref[1]) + dot(x_a, sq_ref[2]) + bias_ref[3:4, :N])

    # ---- pred head: each Linear preceded by elementwise gating with x_p ---------
    x = relu(dot(x * x_p, sq_ref[3]) + bias_ref[4:5, :N])
    x = relu(dot(x * x_p, sq_ref[4]) + bias_ref[5:6, :N])
    x = dot(x * x_p, wq3_ref[...]) + bias_ref[6:7, :F]      # (TB, F)

    # ---- residual add (flat form == Unflatten-then-add) -------------------------
    out_ref[...] = (x + dlo).astype(out_ref.dtype)


# ----------------------------------------------------------------------------
# Wrapper: three separate batch-tiled inputs, weights VMEM-resident, big tiles
# ----------------------------------------------------------------------------
def _round_up(x, m):
    return ((x + m - 1) // m) * m


def fcmul_forward(dlo, action, params, packed, *, tile_b=512):
    B, n_pts, pts_dim = dlo.shape
    F = n_pts * pts_dim
    KA = action.shape[-1]
    KP = params.shape[-1]
    W1D, W1A, W1P, W2, SQ, WQ3, BIAS = packed

    d = dlo.reshape(B, F).astype(jnp.float32)     # contiguous reshape: no HBM copy
    a = action.astype(jnp.float32)
    p = params.astype(jnp.float32)

    # Batch tile: as large as possible (amortize per-step overhead), but capped at
    # ~half the padded batch so grid >= 2 whenever possible (v7x megacore sharding
    # of the "parallel" axis needs at least 2 grid steps; no-op on v5e/v6e).
    B8 = _round_up(B, 8)
    TB = max(8, min(tile_b, _round_up((B8 + 1) // 2, 8)))
    Bp = _round_up(B, TB)
    if Bp != B:                                   # ragged-tail padding only
        pad = ((0, Bp - B), (0, 0))
        d, a, p = jnp.pad(d, pad), jnp.pad(a, pad), jnp.pad(p, pad)

    grid = (Bp // TB,)
    const2 = lambda i: (0, 0)

    out = pl.pallas_call(
        fcmul_kernel,
        out_shape=jax.ShapeDtypeStruct((Bp, F), jnp.float32),
        grid_spec=pltpu.PrefetchScalarGridSpec(
            num_scalar_prefetch=0,
            grid=grid,
            in_specs=[
                pl.BlockSpec((TB, F), lambda i: (i, 0)),      # dlo (flattened)
                pl.BlockSpec((TB, KA), lambda i: (i, 0)),     # action
                pl.BlockSpec((TB, KP), lambda i: (i, 0)),     # params
                pl.BlockSpec(W1D.shape, const2),              # layer-1 dlo block (VMEM-resident)
                pl.BlockSpec(W1A.shape, const2),              # layer-1 act block
                pl.BlockSpec(W1P.shape, const2),              # layer-1 param block
                pl.BlockSpec(W2.shape, const2),               # block-diag layer-2
                pl.BlockSpec(SQ.shape, lambda i: (0, 0, 0)),  # 5 stacked (N,N) weights
                pl.BlockSpec(WQ3.shape, const2),              # (N, F) head weight
                pl.BlockSpec(BIAS.shape, const2),             # padded f32 bias slab
            ],
            out_specs=pl.BlockSpec((TB, F), lambda i: (i, 0)),
        ),
        compiler_params=pltpu.CompilerParams(
            dimension_semantics=("parallel",),                # megacore on v7x
            vmem_limit_bytes=48 * 1024 * 1024),               # headroom for TB >= 1024 sweeps
    )(d, a, p, W1D, W1A, W1P, W2, SQ, WQ3, BIAS)

    return out[:B].reshape(B, n_pts, pts_dim)


# ----------------------------------------------------------------------------
# Deterministic parameter init (mimics torch.nn.Linear U(-1/sqrt(in), 1/sqrt(in)))
# Weights stored as (in_features, out_features); biases as (1, out_features).
# ----------------------------------------------------------------------------
def init_weights(key, n_pts, pts_dim, N):
    F = n_pts * pts_dim
    shapes = [
        (F, N), (N,), (N, N), (N,), (N, N), (N,),      # dlo
        (4, N), (N,), (N, N), (N,),                    # act
        (3, N), (N,), (N, N), (N,),                    # param
        (N, N), (N, N), (N,),                          # state_action (split W, one bias)
        (N, N), (N,), (N, N), (N,), (N, F), (F,),      # pred
    ]
    fan_ins = [
        F, F, N, N, N, N,
        4, 4, N, N,
        3, 3, N, N,
        2 * N, 2 * N, 2 * N,
        N, N, N, N, N, N,
    ]
    weights = []
    for shp, fin in zip(shapes, fan_ins):
        key, sub = jax.random.split(key)
        bound = 1.0 / np.sqrt(fin)
        w = jax.random.uniform(sub, shp, jnp.float32, minval=-bound, maxval=bound)
        if w.ndim == 1:
            w = w.reshape(1, -1)
        weights.append(w)
    return tuple(weights)


# ----------------------------------------------------------------------------
# Pack the 23 module tensors into 7 slabs (column-block fusion, zero off-blocks;
# zeros stay exact in bf16, so no cross-branch leakage)
# ----------------------------------------------------------------------------
def pack_weights(W, n_pts, pts_dim, N, mxu_dtype=MXU_DTYPE):
    (wd1, bd1, wd2, bd2, wd3, bd3,
     wa1, ba1, wa2, ba2,
     wp1, bp1, wp2, bp2,
     wsa_s, wsa_a, bsa,
     wq1, bq1, wq2, bq2, wq3, bq3) = W
    F = n_pts * pts_dim

    W1D = jnp.zeros((F, 3 * N), jnp.float32).at[:, 0:N].set(wd1)
    W1A = jnp.zeros((wa1.shape[0], 3 * N), jnp.float32).at[:, N:2 * N].set(wa1)
    W1P = jnp.zeros((wp1.shape[0], 3 * N), jnp.float32).at[:, 2 * N:3 * N].set(wp1)

    W2 = jnp.zeros((3 * N, 3 * N), jnp.float32)
    W2 = W2.at[0:N, 0:N].set(wd2)
    W2 = W2.at[N:2 * N, N:2 * N].set(wa2)
    W2 = W2.at[2 * N:3 * N, 2 * N:3 * N].set(wp2)

    SQ = jnp.stack([wd3, wsa_s, wsa_a, wq1, wq2], axis=0)     # (5, N, N)

    BW = max(3 * N, F)
    BIAS = jnp.zeros((7, BW), jnp.float32)
    BIAS = BIAS.at[0, 0:3 * N].set(jnp.concatenate([bd1.ravel(), ba1.ravel(), bp1.ravel()]))
    BIAS = BIAS.at[1, 0:3 * N].set(jnp.concatenate([bd2.ravel(), ba2.ravel(), bp2.ravel()]))
    BIAS = BIAS.at[2, 0:N].set(bd3.ravel())
    BIAS = BIAS.at[3, 0:N].set(bsa.ravel())
    BIAS = BIAS.at[4, 0:N].set(bq1.ravel())
    BIAS = BIAS.at[5, 0:N].set(bq2.ravel())
    BIAS = BIAS.at[6, 0:F].set(bq3.ravel())

    return (W1D.astype(mxu_dtype), W1A.astype(mxu_dtype), W1P.astype(mxu_dtype),
            W2.astype(mxu_dtype), SQ.astype(mxu_dtype), wq3.astype(mxu_dtype),
            BIAS)                                             # biases stay f32 (VPU adds)


# ----------------------------------------------------------------------------
# Pure-JAX reference (unfused f32 weights) for correctness check
# ----------------------------------------------------------------------------
def fcmul_reference(dlo, action, params, W):
    (wd1, bd1, wd2, bd2, wd3, bd3,
     wa1, ba1, wa2, ba2,
     wp1, bp1, wp2, bp2,
     wsa_s, wsa_a, bsa,
     wq1, bq1, wq2, bq2, wq3, bq3) = W
    relu = lambda z: jnp.maximum(z, 0.0)
    B, n_pts, pts_dim = dlo.shape
    d = dlo.reshape(B, -1)
    x_s = relu(relu(relu(d @ wd1 + bd1) @ wd2 + bd2) @ wd3 + bd3)
    x_a = relu(relu(action @ wa1 + ba1) @ wa2 + ba2)
    x_p = jnp.tanh(jnp.tanh(params @ wp1 + bp1) @ wp2 + bp2)
    x = relu(x_s @ wsa_s + x_a @ wsa_a + bsa)
    x = relu((x * x_p) @ wq1 + bq1)
    x = relu((x * x_p) @ wq2 + bq2)
    x = (x * x_p) @ wq3 + bq3
    return (x + d).reshape(B, n_pts, pts_dim)


if __name__ == "__main__":
    # Small shapes consistent with the module: n_pts points of pts_dim coords.
    B, n_pts, pts_dim, hidden = 2, 8, 3, 32

    key = jax.random.PRNGKey(0)
    k_dlo, k_act, k_prm, k_w = jax.random.split(key, 4)
    dlo = jax.random.normal(k_dlo, (B, n_pts, pts_dim), jnp.float32)
    action = jax.random.normal(k_act, (B, 4), jnp.float32)
    params = jax.random.normal(k_prm, (B, 3), jnp.float32)

    weights = init_weights(k_w, n_pts, pts_dim, hidden)
    ref = fcmul_reference(dlo, action, params, weights)

    # 1) tight structural check: same kernel with f32 MXU weights
    packed_f32 = pack_weights(weights, n_pts, pts_dim, hidden, mxu_dtype=jnp.float32)
    out_f32 = jax.block_until_ready(fcmul_forward(dlo, action, params, packed_f32))
    np.testing.assert_allclose(np.asarray(out_f32), np.asarray(ref), rtol=1e-4, atol=1e-4)

    # 2) default (bf16-MXU) path, loosened tolerance for bf16 matmul rounding
    packed = pack_weights(weights, n_pts, pts_dim, hidden)
    out = jax.block_until_ready(fcmul_forward(dlo, action, params, packed))
    np.testing.assert_allclose(np.asarray(out), np.asarray(ref), rtol=5e-2, atol=5e-2)

    # 3) multi-tile grid (>= 2 steps) + ragged-batch padding path
    B2 = 300
    k1, k2, k3 = jax.random.split(jax.random.PRNGKey(1), 3)
    dlo2 = jax.random.normal(k1, (B2, n_pts, pts_dim), jnp.float32)
    act2 = jax.random.normal(k2, (B2, 4), jnp.float32)
    prm2 = jax.random.normal(k3, (B2, 3), jnp.float32)
    out2 = jax.block_until_ready(fcmul_forward(dlo2, act2, prm2, packed))
    ref2 = fcmul_reference(dlo2, act2, prm2, weights)
    np.testing.assert_allclose(np.asarray(out2), np.asarray(ref2), rtol=5e-2, atol=5e-2)

    # TODO(synk): scale_dlo_actioncentric branch (self.scale=True) is not defined
    # in the provided module source, so only the scale=False path is implemented.
    print("KERNEL_OK")
</pallas_src>

<mosaic_0001>
module attributes {stable_mosaic.version = 11 : i64} {
  func.func @fcmul_kernel(%arg0: i32, %arg1: memref<8x24xf32, #tpu.memory_space<vmem>>, %arg2: memref<8x4xf32, #tpu.memory_space<vmem>>, %arg3: memref<8x3xf32, #tpu.memory_space<vmem>>, %arg4: memref<24x96xf32, #tpu.memory_space<vmem>>, %arg5: memref<4x96xf32, #tpu.memory_space<vmem>>, %arg6: memref<3x96xf32, #tpu.memory_space<vmem>>, %arg7: memref<96x96xf32, #tpu.memory_space<vmem>>, %arg8: memref<5x32x32xf32, #tpu.memory_space<vmem>>, %arg9: memref<32x24xf32, #tpu.memory_space<vmem>>, %arg10: memref<7x96xf32, #tpu.memory_space<vmem>>, %arg11: memref<8x24xf32, #tpu.memory_space<vmem>>) attributes {dimension_semantics = [#tpu.dimension_semantics<parallel>], iteration_bounds = array<i64: 1>, scalar_prefetch = 0 : i64, scratch_operands = 0 : i64, tpu.core_type = #tpu.core_type<tc>, window_params = [{transform_indices = @transform_0, window_bounds = array<i64: 8, 24>}, {transform_indices = @transform_1, window_bounds = array<i64: 8, 4>}, {transform_indices = @transform_2, window_bounds = array<i64: 8, 3>}, {pipeline_mode = #tpu.pipeline_mode<synchronous>, transform_indices = @transform_3, window_bounds = array<i64: 24, 96>}, {pipeline_mode = #tpu.pipeline_mode<synchronous>, transform_indices = @transform_4, window_bounds = array<i64: 4, 96>}, {pipeline_mode = #tpu.pipeline_mode<synchronous>, transform_indices = @transform_5, window_bounds = array<i64: 3, 96>}, {pipeline_mode = #tpu.pipeline_mode<synchronous>, transform_indices = @transform_6, window_bounds = array<i64: 96, 96>}, {pipeline_mode = #tpu.pipeline_mode<synchronous>, transform_indices = @transform_7, window_bounds = array<i64: 5, 32, 32>}, {pipeline_mode = #tpu.pipeline_mode<synchronous>, transform_indices = @transform_8, window_bounds = array<i64: 32, 24>}, {pipeline_mode = #tpu.pipeline_mode<synchronous>, transform_indices = @transform_9, window_bounds = array<i64: 7, 96>}, {transform_indices = @transform_10, window_bounds = array<i64: 8, 24>}]} {
    %c0 = arith.constant 0 : index
    %c0_0 = arith.constant 0 : index
    %0 = vector.load %arg1[%c0, %c0_0] : memref<8x24xf32, #tpu.memory_space<vmem>>, vector<8x24xf32>
    %c0_1 = arith.constant 0 : index
    %c0_2 = arith.constant 0 : index
    %1 = vector.load %arg2[%c0_1, %c0_2] : memref<8x4xf32, #tpu.memory_space<vmem>>, vector<8x4xf32>
    %c0_3 = arith.constant 0 : index
    %c0_4 = arith.constant 0 : index
    %2 = vector.load %arg3[%c0_3, %c0_4] : memref<8x3xf32, #tpu.memory_space<vmem>>, vector<8x3xf32>
    %c0_5 = arith.constant 0 : index
    %c0_6 = arith.constant 0 : index
    %3 = vector.load %arg4[%c0_5, %c0_6] : memref<24x96xf32, #tpu.memory_space<vmem>>, vector<24x96xf32>
    %cst = arith.constant dense<0.000000e+00> : vector<8x96xf32>
    %4 = tpu.matmul %0, %3, %cst {dimension_numbers = #tpu.dot_dimension_numbers<[1], [0], [0], [1], [0, 0, 1, 1], [], []>} : vector<8x24xf32>, vector<24x96xf32>, vector<8x96xf32> -> vector<8x96xf32>
    %c0_7 = arith.constant 0 : index
    %c0_8 = arith.constant 0 : index
    %5 = vector.load %arg5[%c0_7, %c0_8] : memref<4x96xf32, #tpu.memory_space<vmem>>, vector<4x96xf32>
    %cst_9 = arith.constant dense<0.000000e+00> : vector<8x96xf32>
    %6 = tpu.matmul %1, %5, %cst_9 {dimension_numbers = #tpu.dot_dimension_numbers<[1], [0], [0], [1], [0, 0, 1, 1], [], []>} : vector<8x4xf32>, vector<4x96xf32>, vector<8x96xf32> -> vector<8x96xf32>
    %7 = arith.addf %4, %6 : vector<8x96xf32>
    %c0_10 = arith.constant 0 : index
    %c0_11 = arith.constant 0 : index
    %8 = vector.load %arg6[%c0_10, %c0_11] : memref<3x96xf32, #tpu.memory_space<vmem>>, vector<3x96xf32>
    %cst_12 = arith.constant dense<0.000000e+00> : vector<8x96xf32>
    %9 = tpu.matmul %2, %8, %cst_12 {dimension_numbers = #tpu.dot_dimension_numbers<[1], [0], [0], [1], [0, 0, 1, 1], [], []>} : vector<8x3xf32>, vector<3x96xf32>, vector<8x96xf32> -> vector<8x96xf32>
    %10 = arith.addf %7, %9 : vector<8x96xf32>
    %c0_13 = arith.constant 0 : index
    %c0_14 = arith.constant 0 : index
    %11 = vector.load %arg10[%c0_13, %c0_14] : memref<7x96xf32, #tpu.memory_space<vmem>>, vector<1x96xf32>
    %12 = vector.broadcast %11 : vector<1x96xf32> to vector<8x96xf32>
    %13 = arith.addf %10, %12 : vector<8x96xf32>
    %14 = tpu.iota {dimensions = array<i32: 1>} : vector<8x96xi32>
    %c64_i32 = arith.constant 64 : i32
    %15 = vector.broadcast %c64_i32 : i32 to vector<8x96xi32>
    %16 = arith.cmpi slt, %14, %15 : vector<8x96xi32>
    %cst_15 = arith.constant 0.000000e+00 : f32
    %17 = vector.broadcast %cst_15 : f32 to vector<8x96xf32>
    %18 = arith.maximumf %13, %17 : vector<8x96xf32>
    %19 = math.tanh %13 : vector<8x96xf32>
    %20 = arith.select %16, %18, %19 : vector<8x96xi1>, vector<8x96xf32>
    %c0_16 = arith.constant 0 : index
    %c0_17 = arith.constant 0 : index
    %21 = vector.load %arg7[%c0_16, %c0_17] : memref<96x96xf32, #tpu.memory_space<vmem>>, vector<96x96xf32>
    %cst_18 = arith.constant dense<0.000000e+00> : vector<8x96xf32>
    %22 = tpu.matmul %20, %21, %cst_18 {dimension_numbers = #tpu.dot_dimension_numbers<[1], [0], [0], [1], [0, 0, 1, 1], [], []>} : vector<8x96xf32>, vector<96x96xf32>, vector<8x96xf32> -> vector<8x96xf32>
    %c1 = arith.constant 1 : index
    %c0_19 = arith.constant 0 : index
    %23 = vector.load %arg10[%c1, %c0_19] : memref<7x96xf32, #tpu.memory_space<vmem>>, vector<1x96xf32>
    %24 = vector.broadcast %23 : vector<1x96xf32> to vector<8x96xf32>
    %25 = arith.addf %22, %24 : vector<8x96xf32>
    %c64_i32_20 = arith.constant 64 : i32
    %26 = vector.broadcast %c64_i32_20 : i32 to vector<8x96xi32>
    %27 = arith.cmpi slt, %14, %26 : vector<8x96xi32>
    %cst_21 = arith.constant 0.000000e+00 : f32
    %28 = vector.broadcast %cst_21 : f32 to vector<8x96xf32>
    %29 = arith.maximumf %25, %28 : vector<8x96xf32>
    %30 = math.tanh %25 : vector<8x96xf32>
    %31 = arith.select %27, %29, %30 : vector<8x96xi1>, vector<8x96xf32>
    %32 = vector.extract_strided_slice %31 {offsets = [0, 0], sizes = [8, 32], strides = [1, 1]} : vector<8x96xf32> to vector<8x32xf32>
    %33 = vector.extract_strided_slice %31 {offsets = [0, 32], sizes = [8, 32], strides = [1, 1]} : vector<8x96xf32> to vector<8x32xf32>
    %34 = vector.extract_strided_slice %31 {offsets = [0, 64], sizes = [8, 32], strides = [1, 1]} : vector<8x96xf32> to vector<8x32xf32>
    %c0_22 = arith.constant 0 : index
    %c0_23 = arith.constant 0 : index
    %c0_24 = arith.constant 0 : index
    %35 = vector.load %arg8[%c0_22, %c0_23, %c0_24] : memref<5x32x32xf32, #tpu.memory_space<vmem>>, vector<1x32x32xf32>
    %36 = vector.shape_cast %35 : vector<1x32x32xf32> to vector<32x32xf32>
    %cst_25 = arith.constant dense<0.000000e+00> : vector<8x32xf32>
    %37 = tpu.matmul %32, %36, %cst_25 {dimension_numbers = #tpu.dot_dimension_numbers<[1], [0], [0], [1], [0, 0, 1, 1], [], []>} : vector<8x32xf32>, vector<32x32xf32>, vector<8x32xf32> -> vector<8x32xf32>
    %c2 = arith.constant 2 : index
    %c0_26 = arith.constant 0 : index
    %38 = vector.load %arg10[%c2, %c0_26] : memref<7x96xf32, #tpu.memory_space<vmem>>, vector<1x32xf32>
    %39 = vector.broadcast %38 : vector<1x32xf32> to vector<8x32xf32>
    %40 = arith.addf %37, %39 : vector<8x32xf32>
    %cst_27 = arith.constant 0.000000e+00 : f32
    %41 = vector.broadcast %cst_27 : f32 to vector<8x32xf32>
    %42 = arith.maximumf %40, %41 : vector<8x32xf32>
    %c1_28 = arith.constant 1 : index
    %c0_29 = arith.constant 0 : index
    %c0_30 = arith.constant 0 : index
    %43 = vector.load %arg8[%c1_28, %c0_29, %c0_30] : memref<5x32x32xf32, #tpu.memory_space<vmem>>, vector<1x32x32xf32>
    %44 = vector.shape_cast %43 : vector<1x32x32xf32> to vector<32x32xf32>
    %cst_31 = arith.constant dense<0.000000e+00> : vector<8x32xf32>
    %45 = tpu.matmul %42, %44, %cst_31 {dimension_numbers = #tpu.dot_dimension_numbers<[1], [0], [0], [1], [0, 0, 1, 1], [], []>} : vector<8x32xf32>, vector<32x32xf32>, vector<8x32xf32> -> vector<8x32xf32>
    %c2_32 = arith.constant 2 : index
    %c0_33 = arith.constant 0 : index
    %c0_34 = arith.constant 0 : index
    %46 = vector.load %arg8[%c2_32, %c0_33, %c0_34] : memref<5x32x32xf32, #tpu.memory_space<vmem>>, vector<1x32x32xf32>
    %47 = vector.shape_cast %46 : vector<1x32x32xf32> to vector<32x32xf32>
    %cst_35 = arith.constant dense<0.000000e+00> : vector<8x32xf32>
    %48 = tpu.matmul %33, %47, %cst_35 {dimension_numbers = #tpu.dot_dimension_numbers<[1], [0], [0], [1], [0, 0, 1, 1], [], []>} : vector<8x32xf32>, vector<32x32xf32>, vector<8x32xf32> -> vector<8x32xf32>
    %49 = arith.addf %45, %48 : vector<8x32xf32>
    %c3 = arith.constant 3 : index
    %c0_36 = arith.constant 0 : index
    %50 = vector.load %arg10[%c3, %c0_36] : memref<7x96xf32, #tpu.memory_space<vmem>>, vector<1x32xf32>
    %51 = vector.broadcast %50 : vector<1x32xf32> to vector<8x32xf32>
    %52 = arith.addf %49, %51 : vector<8x32xf32>
    %cst_37 = arith.constant 0.000000e+00 : f32
    %53 = vector.broadcast %cst_37 : f32 to vector<8x32xf32>
    %54 = arith.maximumf %52, %53 : vector<8x32xf32>
    %55 = arith.mulf %54, %34 : vector<8x32xf32>
    %c3_38 = arith.constant 3 : index
    %c0_39 = arith.constant 0 : index
    %c0_40 = arith.constant 0 : index
    %56 = vector.load %arg8[%c3_38, %c0_39, %c0_40] : memref<5x32x32xf32, #tpu.memory_space<vmem>>, vector<1x32x32xf32>
    %57 = vector.shape_cast %56 : vector<1x32x32xf32> to vector<32x32xf32>
    %cst_41 = arith.constant dense<0.000000e+00> : vector<8x32xf32>
    %58 = tpu.matmul %55, %57, %cst_41 {dimension_numbers = #tpu.dot_dimension_numbers<[1], [0], [0], [1], [0, 0, 1, 1], [], []>} : vector<8x32xf32>, vector<32x32xf32>, vector<8x32xf32> -> vector<8x32xf32>
    %c4 = arith.constant 4 : index
    %c0_42 = arith.constant 0 : index
    %59 = vector.load %arg10[%c4, %c0_42] : memref<7x96xf32, #tpu.memory_space<vmem>>, vector<1x32xf32>
    %60 = vector.broadcast %59 : vector<1x32xf32> to vector<8x32xf32>
    %61 = arith.addf %58, %60 : vector<8x32xf32>
    %cst_43 = arith.constant 0.000000e+00 : f32
    %62 = vector.broadcast %cst_43 : f32 to vector<8x32xf32>
    %63 = arith.maximumf %61, %62 : vector<8x32xf32>
    %64 = arith.mulf %63, %34 : vector<8x32xf32>
    %c4_44 = arith.constant 4 : index
    %c0_45 = arith.constant 0 : index
    %c0_46 = arith.constant 0 : index
    %65 = vector.load %arg8[%c4_44, %c0_45, %c0_46] : memref<5x32x32xf32, #tpu.memory_space<vmem>>, vector<1x32x32xf32>
    %66 = vector.shape_cast %65 : vector<1x32x32xf32> to vector<32x32xf32>
    %cst_47 = arith.constant dense<0.000000e+00> : vector<8x32xf32>
    %67 = tpu.matmul %64, %66, %cst_47 {dimension_numbers = #tpu.dot_dimension_numbers<[1], [0], [0], [1], [0, 0, 1, 1], [], []>} : vector<8x32xf32>, vector<32x32xf32>, vector<8x32xf32> -> vector<8x32xf32>
    %c5 = arith.constant 5 : index
    %c0_48 = arith.constant 0 : index
    %68 = vector.load %arg10[%c5, %c0_48] : memref<7x96xf32, #tpu.memory_space<vmem>>, vector<1x32xf32>
    %69 = vector.broadcast %68 : vector<1x32xf32> to vector<8x32xf32>
    %70 = arith.addf %67, %69 : vector<8x32xf32>
    %cst_49 = arith.constant 0.000000e+00 : f32
    %71 = vector.broadcast %cst_49 : f32 to vector<8x32xf32>
    %72 = arith.maximumf %70, %71 : vector<8x32xf32>
    %73 = arith.mulf %72, %34 : vector<8x32xf32>
    %c0_50 = arith.constant 0 : index
    %c0_51 = arith.constant 0 : index
    %74 = vector.load %arg9[%c0_50, %c0_51] : memref<32x24xf32, #tpu.memory_space<vmem>>, vector<32x24xf32>
    %cst_52 = arith.constant dense<0.000000e+00> : vector<8x24xf32>
    %75 = tpu.matmul %73, %74, %cst_52 {dimension_numbers = #tpu.dot_dimension_numbers<[1], [0], [0], [1], [0, 0, 1, 1], [], []>} : vector<8x32xf32>, vector<32x24xf32>, vector<8x24xf32> -> vector<8x24xf32>
    %c6 = arith.constant 6 : index
    %c0_53 = arith.constant 0 : index
    %76 = vector.load %arg10[%c6, %c0_53] : memref<7x96xf32, #tpu.memory_space<vmem>>, vector<1x24xf32>
    %77 = vector.broadcast %76 : vector<1x24xf32> to vector<8x24xf32>
    %78 = arith.addf %75, %77 : vector<8x24xf32>
    %79 = arith.addf %78, %0 : vector<8x24xf32>
    %c0_54 = arith.constant 0 : index
    %c0_55 = arith.constant 0 : index
    %80 = vector.load %arg11[%c0_54, %c0_55] : memref<8x24xf32, #tpu.memory_space<vmem>>, vector<8x24xf32>
    tpu.vector_store %arg11[%c0_54, %c0_55], %79 {strides = array<i32>} : memref<8x24xf32, #tpu.memory_space<vmem>>, vector<8x24xf32>,
    return
  }
  func.func @transform_0(%arg0: i32) -> (i32, i32) {
    %c0_i32 = arith.constant 0 : i32
    %c0_i32_0 = arith.constant 0 : i32
    return %arg0, %c0_i32 : i32, i32
  }
  func.func @transform_1(%arg0: i32) -> (i32, i32) {
    %c0_i32 = arith.constant 0 : i32
    %c0_i32_0 = arith.constant 0 : i32
    return %arg0, %c0_i32 : i32, i32
  }
  func.func @transform_2(%arg0: i32) -> (i32, i32) {
    %c0_i32 = arith.constant 0 : i32
    %c0_i32_0 = arith.constant 0 : i32
    return %arg0, %c0_i32 : i32, i32
  }
  func.func @transform_3(%arg0: i32) -> (i32, i32) {
    %c0_i32 = arith.constant 0 : i32
    %c0_i32_0 = arith.constant 0 : i32
    %c0_i32_1 = arith.constant 0 : i32
    return %c0_i32, %c0_i32_0 : i32, i32
  }
  func.func @transform_4(%arg0: i32) -> (i32, i32) {
    %c0_i32 = arith.constant 0 : i32
    %c0_i32_0 = arith.constant 0 : i32
    %c0_i32_1 = arith.constant 0 : i32
    return %c0_i32, %c0_i32_0 : i32, i32
  }
  func.func @transform_5(%arg0: i32) -> (i32, i32) {
    %c0_i32 = arith.constant 0 : i32
    %c0_i32_0 = arith.constant 0 : i32
    %c0_i32_1 = arith.constant 0 : i32
    return %c0_i32, %c0_i32_0 : i32, i32
  }
  func.func @transform_6(%arg0: i32) -> (i32, i32) {
    %c0_i32 = arith.constant 0 : i32
    %c0_i32_0 = arith.constant 0 : i32
    %c0_i32_1 = arith.constant 0 : i32
    return %c0_i32, %c0_i32_0 : i32, i32
  }
  func.func @transform_7(%arg0: i32) -> (i32, i32, i32) {
    %c0_i32 = arith.constant 0 : i32
    %c0_i32_0 = arith.constant 0 : i32
    %c0_i32_1 = arith.constant 0 : i32
    %c0_i32_2 = arith.constant 0 : i32
    return %c0_i32, %c0_i32_0, %c0_i32_1 : i32, i32, i32
  }
  func.func @transform_8(%arg0: i32) -> (i32, i32) {
    %c0_i32 = arith.constant 0 : i32
    %c0_i32_0 = arith.constant 0 : i32
    %c0_i32_1 = arith.constant 0 : i32
    return %c0_i32, %c0_i32_0 : i32, i32
  }
  func.func @transform_9(%arg0: i32) -> (i32, i32) {
    %c0_i32 = arith.constant 0 : i32
    %c0_i32_0 = arith.constant 0 : i32
    %c0_i32_1 = arith.constant 0 : i32
    return %c0_i32, %c0_i32_0 : i32, i32
  }
  func.func @transform_10(%arg0: i32) -> (i32, i32) {
    %c0_i32 = arith.constant 0 : i32
    %c0_i32_0 = arith.constant 0 : i32
    return %arg0, %c0_i32 : i32, i32
  }
}

</mosaic_0001>

<llo_original>
// kernel: tpu_custom_call.1
$region0: #{tpu_custom_call.1}
  #allocation0 [shape = 'u32[]', space=smem, size = 0x4, offset = 0x4, fixed_abs, tag = 'smem constant byte address 0x4 - core index']
  #allocation1 [shape = 'u32[144,128]{1,0:T(1,128)}', space=vmem, size = 0x12000, scoped, tag = 'internal scratch']
  %s0 = inlined_call_operand.vmem [shape: f32[8,24], index: 0, kind: input, shape index: {}]
  %s1 = inlined_call_operand.vmem [shape: f32[8,4], index: 1, kind: input, shape index: {}]
  %s2 = inlined_call_operand.vmem [shape: f32[8,3], index: 2, kind: input, shape index: {}]
  %s3 = inlined_call_operand.vmem [shape: f32[24,96], index: 3, kind: input, shape index: {}]
  %s4 = inlined_call_operand.vmem [shape: f32[4,96], index: 4, kind: input, shape index: {}]
  %s5 = inlined_call_operand.vmem [shape: f32[3,96], index: 5, kind: input, shape index: {}]
  %s6 = inlined_call_operand.hbm [shape: f32[96,96], index: 6, kind: input, shape index: {}]
  %s7 = inlined_call_operand.hbm [shape: f32[5,32,32], index: 7, kind: input, shape index: {}]
  %s8 = inlined_call_operand.vmem [shape: f32[32,24], index: 8, kind: input, shape index: {}]
  %s9 = inlined_call_operand.vmem [shape: f32[7,96], index: 9, kind: input, shape index: {}]
  %s10 = inlined_call_operand.hbm [shape: f32[8,24], index: 10, kind: output, shape index: {}]
  %s11 = sld [smem:[#allocation0]]
  $region58: #{tpu_custom_call.1} parent=0
    _
  %s13 = ssub.s32 1, %s11
  %s14 = scalar_select 0, %s13, %s11
  $region1: #{tpu_custom_call.1} parent=0
    #allocation2 [shape = 'u8[49152]{0}', space=vmem, size = 0xc000, scoped, tag = 'input window, operand 6, single buffered']
    #allocation3 [shape = 's32[1]{0}', space=sflag, size = 0x4, scoped, tag = 'scoped memory for tpu_custom_call.1']
    #allocation4 [shape = 's32[1]{0}', space=sflag, size = 0x4, scoped, tag = 'scoped memory for tpu_custom_call.1']
    #allocation5 [shape = 'u8[81920]{0}', space=vmem, size = 0x14000, scoped, tag = 'input window, operand 7, single buffered']
    #allocation6 [shape = 's32[1]{0}', space=sflag, size = 0x4, scoped, tag = 'scoped memory for tpu_custom_call.1']
    #allocation7 [shape = 'u8[4096]{0}', space=vmem, size = 0x1000, scoped, tag = 'output window, operand 0, single buffered']
    %15 = vsyncpa [#allocation3], 0
    %16 = vsyncpa [#allocation6], 0
    %17 = vsyncpa [#allocation4], 0
    // Predicated region
    $region2: #{tpu_custom_call.1} parent=1 // pred_check
      _
    $region3: #{tpu_custom_call.1} parent=1 // pred_check_branch
      %19 = sbr.rel (0) target = $region5
    $region4: #{tpu_custom_call.1} parent=1 // pred_region
      _
    $region5: #{tpu_custom_call.1} parent=1 // pred_fallthru
      _
    // Predicated region
    $region6: #{tpu_custom_call.1} parent=1 // pred_check
      _
    $region7: #{tpu_custom_call.1} parent=1 // pred_check_branch
      %21 = sbr.rel (0) target = $region9
    $region8: #{tpu_custom_call.1} parent=1 // pred_region
      _
    $region9: #{tpu_custom_call.1} parent=1 // pred_fallthru
      _
    // Predicated region
    $region10: #{tpu_custom_call.1} parent=1 // pred_check
      _
    $region11: #{tpu_custom_call.1} parent=1 // pred_check_branch
      %23 = sbr.rel (0) target = $region13
    $region12: #{tpu_custom_call.1} parent=1 // pred_region
      _
    $region13: #{tpu_custom_call.1} parent=1 // pred_fallthru
      _
    // Predicated region
    $region14: #{tpu_custom_call.1} parent=1 // pred_check
      _
    $region15: #{tpu_custom_call.1} parent=1 // pred_check_branch
      %25 = sbr.rel (0) target = $region17
    $region16: #{tpu_custom_call.1} parent=1 // pred_region
      _
    $region17: #{tpu_custom_call.1} parent=1 // pred_fallthru
      _
    // Predicated region
    $region18: #{tpu_custom_call.1} parent=1 // pred_check
      _
    $region19: #{tpu_custom_call.1} parent=1 // pred_check_branch
      %27 = sbr.rel (0) target = $region21
    $region20: #{tpu_custom_call.1} parent=1 // pred_region
      _
    $region21: #{tpu_custom_call.1} parent=1 // pred_fallthru
      _
    // Predicated region
    $region22: #{tpu_custom_call.1} parent=1 // pred_check
      _
    $region23: #{tpu_custom_call.1} parent=1 // pred_check_branch
      %29 = sbr.rel (0) target = $region25
    $region24: #{tpu_custom_call.1} parent=1 // pred_region
      _
    $region25: #{tpu_custom_call.1} parent=1 // pred_fallthru
      _
    // Predicated region
    $region26: #{tpu_custom_call.1} parent=1 // pred_check
      _
    $region27: #{tpu_custom_call.1} parent=1 // pred_check_branch
      %31 = sbr.rel (0) target = $region29
    $region28: #{tpu_custom_call.1} parent=1 // pred_region
      %s33 = ssub.s32 1536, 1536
      %34 = vsyncadd [#allocation3], %s33
      %s35 = sshll.u32 [#allocation2], 4
      %s36 = int_to_ptr.vmem [resolvable:$true] %s35
      %41 = dma.hbm_to_vmem [thread:$0]  %s6, 1536, %s36, [#allocation3], 128, 128, 8
    $region29: #{tpu_custom_call.1} parent=1 // pred_fallthru
      _
    // Predicated region
    $region30: #{tpu_custom_call.1} parent=1 // pred_check
      _
    $region31: #{tpu_custom_call.1} parent=1 // pred_check_branch
      %43 = sbr.rel (0) target = $region33
    $region32: #{tpu_custom_call.1} parent=1 // pred_region
      %s45 = ssub.s32 2560, 2560
      %46 = vsyncadd [#allocation6], %s45
      %s47 = sshll.u32 [#allocation5], 4
      %s48 = int_to_ptr.vmem [resolvable:$true] %s47
      %53 = dma.hbm_to_vmem [thread:$0]  %s7, 2560, %s48, [#allocation6], 128, 128, 8
    $region33: #{tpu_custom_call.1} parent=1 // pred_fallthru
      _
    // Predicated region
    $region34: #{tpu_custom_call.1} parent=1 // pred_check
      _
    $region35: #{tpu_custom_call.1} parent=1 // pred_check_branch
      %55 = sbr.rel (0) target = $region37
    $region36: #{tpu_custom_call.1} parent=1 // pred_region
      _
    $region37: #{tpu_custom_call.1} parent=1 // pred_fallthru
      _
    // Predicated region
    $region38: #{tpu_custom_call.1} parent=1 // pred_check
      _
    $region39: #{tpu_custom_call.1} parent=1 // pred_check_branch
      %57 = sbr.rel (0) target = $region41
    $region40: #{tpu_custom_call.1} parent=1 // pred_region
      _
    $region41: #{tpu_custom_call.1} parent=1 // pred_fallthru
      _
    // Predicated region
    $region42: #{tpu_custom_call.1} parent=1 // pred_check
      _
    $region43: #{tpu_custom_call.1} parent=1 // pred_check_branch
      %59 = sbr.rel (0) target = $region45
    $region44: #{tpu_custom_call.1} parent=1 // pred_region
      %60 = dma.done [#allocation3], 1536
    $region45: #{tpu_custom_call.1} parent=1 // pred_fallthru
      _
    // Predicated region
    $region46: #{tpu_custom_call.1} parent=1 // pred_check
      _
    $region47: #{tpu_custom_call.1} parent=1 // pred_check_branch
      %62 = sbr.rel (0) target = $region49
    $region48: #{tpu_custom_call.1} parent=1 // pred_region
      %63 = dma.done [#allocation6], 2560
    $region49: #{tpu_custom_call.1} parent=1 // pred_fallthru
      _
    %v64 = vld [vmem:[%s0] sm:$0xff]
    %v65 = vld [vmem:[%s1] sm:$0xff]
    %v66 = vld [vmem:[%s2] sm:$0xff]
    %v67 = vld [vmem:[%s3] sm:$0xff]
    %v68 = vld [vmem:[%s3 + $0x8] sm:$0xff]
    %v69 = vld [vmem:[%s3 + $0x10] sm:$0xff]
    %v70 = vld [vmem:[%s4] sm:$0xf]
    %vm71 = vcmask 31744
    %v73 = vsel %vm71, %v65, 0
    %vm75 = vcmask 1043456
    %v77 = vsel %vm75, %v70, 0
    %79 = vmatprep.subr.mxu0 0.0
    %80 = vmatpush1.msra.mxu0 0.0
    %81 = vmatprep.subr.mxu0 0.0
    %82 = vmatpush1.msra.mxu0 0.0
    %83 = vmatprep.subr.mxu0 0.0
    %84 = vmatpush1.msra.mxu0 0.0
    %85 = vmatprep.subr.mxu0 0.0
    %86 = vmatpush1.msra.mxu0 0.0
    %87 = vmatprep.subr.mxu0 0.0
    %88 = vmatpush1.msra.mxu0 0.0
    %89 = vmatprep.subr.mxu0 0.0
    %90 = vmatpush1.msra.mxu0 0.0
    %91 = vmatprep.subr.mxu0 0.0
    %92 = vmatpush1.msra.mxu0 0.0
    %93 = vmatprep.subr.mxu0 0.0
    %94 = vmatpush1.msra.mxu0 0.0
    %95 = vmatprep.subr.mxu0 0.0
    %96 = vmatpush1.msra.mxu0 0.0
    %97 = vmatprep.subr.mxu0 0.0
    %98 = vmatpush1.msra.mxu0 0.0
    %99 = vmatprep.subr.mxu0 0.0
    %100 = vmatpush1.msra.mxu0 0.0
    %101 = vmatprep.subr.mxu0 0.0
    %102 = vmatpush1.msra.mxu0 0.0
    %103 = vmatprep.subr.mxu0 0.0
    %104 = vmatpush1.msra.mxu0 0.0
    %105 = vmatprep.subr.mxu0 0.0
    %106 = vmatpush1.msra.mxu0 0.0
    %107 = vmatprep.subr.mxu0 0.0
    %108 = vmatpush1.msra.mxu0 0.0
    %109 = vmatprep.subr.mxu0 0.0
    %110 = vmatpush1.msra.mxu0 %v77
    %111 = vmatprep.subr.mxu0 0.0
    %112 = vmatpush2.msra.mxu0 0.0
    %113 = vmatprep.subr.mxu0 0.0
    %114 = vmatpush2.msra.mxu0 0.0
    %115 = vmatprep.subr.mxu0 0.0
    %116 = vmatpush2.msra.mxu0 0.0
    %117 = vmatprep.subr.mxu0 0.0
    %118 = vmatpush2.msra.mxu0 0.0
    %119 = vmatprep.subr.mxu0 0.0
    %120 = vmatpush2.msra.mxu0 0.0
    %121 = vmatprep.subr.mxu0 0.0
    %122 = vmatpush2.msra.mxu0 0.0
    %123 = vmatprep.subr.mxu0 0.0
    %124 = vmatpush2.msra.mxu0 0.0
    %125 = vmatprep.subr.mxu0 0.0
    %126 = vmatpush2.msra.mxu0 0.0
    %127 = vmatprep.subr.mxu0 0.0
    %128 = vmatpush2.msra.mxu0 0.0
    %129 = vmatprep.subr.mxu0 0.0
    %130 = vmatpush2.msra.mxu0 0.0
    %131 = vmatprep.subr.mxu0 0.0
    %132 = vmatpush2.msra.mxu0 0.0
    %133 = vmatprep.subr.mxu0 0.0
    %134 = vmatpush2.msra.mxu0 0.0
    %135 = vmatprep.subr.mxu0 0.0
    %136 = vmatpush2.msra.mxu0 0.0
    %137 = vmatprep.subr.mxu0 0.0
    %138 = vmatpush2.msra.mxu0 0.0
    %139 = vmatprep.subr.mxu0 0.0
    %140 = vmatpush2.msra.mxu0 0.0
    %141 = vmatprep.subr.mxu0 0.0
    %142 = vmatpush2.msra.mxu0 0.0
    %143 = vmatprep.mubr.f32.mxu0 0.0
    %144 = vmatmul.mubr.f32.gmra.mxu0 %v73
    %v145 = vpop.f32.mrf.mxu0
    %v146 = vadd.f32 0.0, %v145
    %v147 = vpop.f32.mrf.mxu0
    %148 = vdwg.mxu0
    %vm149 = vcmask 195584
    %v151 = vsel %vm149, %v64, 0
    %153 = vmatprep.subr.mxu0 0.0
    %154 = vmatpush1.msra.mxu0 0.0
    %155 = vmatprep.subr.mxu0 0.0
    %156 = vmatpush1.msra.mxu0 0.0
    %157 = vmatprep.subr.mxu0 0.0
    %158 = vmatpush1.msra.mxu0 0.0
    %159 = vmatprep.subr.mxu0 0.0
    %160 = vmatpush1.msra.mxu0 0.0
    %161 = vmatprep.subr.mxu0 0.0
    %162 = vmatpush1.msra.mxu0 0.0
    %163 = vmatprep.subr.mxu0 0.0
    %164 = vmatpush1.msra.mxu0 0.0
    %165 = vmatprep.subr.mxu0 0.0
    %166 = vmatpush1.msra.mxu0 0.0
    %167 = vmatprep.subr.mxu0 0.0
    %168 = vmatpush1.msra.mxu0 0.0
    %169 = vmatprep.subr.mxu0 0.0
    %170 = vmatpush1.msra.mxu0 0.0
    %171 = vmatprep.subr.mxu0 0.0
    %172 = vmatpush1.msra.mxu0 0.0
    %173 = vmatprep.subr.mxu0 0.0
    %174 = vmatpush1.msra.mxu0 0.0
    %175 = vmatprep.subr.mxu0 0.0
    %176 = vmatpush1.msra.mxu0 0.0
    %177 = vmatprep.subr.mxu0 0.0
    %178 = vmatpush1.msra.mxu0 0.0
    %179 = vmatprep.subr.mxu0 0.0
    %180 = vmatpush1.msra.mxu0 %v69
    %181 = vmatprep.subr.mxu0 0.0
    %182 = vmatpush1.msra.mxu0 %v68
    %183 = vmatprep.subr.mxu0 0.0
    %184 = vmatpush1.msra.mxu0 %v67
    %185 = vmatprep.subr.mxu0 0.0
    %186 = vmatpush2.msra.mxu0 0.0
    %187 = vmatprep.subr.mxu0 0.0
    %188 = vmatpush2.msra.mxu0 0.0
    %189 = vmatprep.subr.mxu0 0.0
    %190 = vmatpush2.msra.mxu0 0.0
    %191 = vmatprep.subr.mxu0 0.0
    %192 = vmatpush2.msra.mxu0 0.0
    %193 = vmatprep.subr.mxu0 0.0
    %194 = vmatpush2.msra.mxu0 0.0
    %195 = vmatprep.subr.mxu0 0.0
    %196 = vmatpush2.msra.mxu0 0.0
    %197 = vmatprep.subr.mxu0 0.0
    %198 = vmatpush2.msra.mxu0 0.0
    %199 = vmatprep.subr.mxu0 0.0
    %200 = vmatpush2.msra.mxu0 0.0
    %201 = vmatprep.subr.mxu0 0.0
    %202 = vmatpush2.msra.mxu0 0.0
    %203 = vmatprep.subr.mxu0 0.0
    %204 = vmatpush2.msra.mxu0 0.0
    %205 = vmatprep.subr.mxu0 0.0
    %206 = vmatpush2.msra.mxu0 0.0
    %207 = vmatprep.subr.mxu0 0.0
    %208 = vmatpush2.msra.mxu0 0.0
    %209 = vmatprep.subr.mxu0 0.0
    %210 = vmatpush2.msra.mxu0 0.0
    %211 = vmatprep.subr.mxu0 0.0
    %212 = vmatpush2.msra.mxu0 0.0
    %213 = vmatprep.subr.mxu0 0.0
    %214 = vmatpush2.msra.mxu0 0.0
    %215 = vmatprep.subr.mxu0 0.0
    %216 = vmatpush2.msra.mxu0 0.0
    %217 = vmatprep.mubr.f32.mxu0 0.0
    %218 = vmatmul.mubr.f32.gmra.mxu0 %v151
    %v219 = vpop.f32.mrf.mxu0
    %v220 = vadd.f32 %v146, %v219
    %v221 = vpop.f32.mrf.mxu0
    %222 = vdwg.mxu0
    %v223 = vld [vmem:[%s5] sm:$0x7]
    %vm224 = vcmask 23552
    %v226 = vsel %vm224, %v66, 0
    %vm228 = vcmask 1042432
    %v230 = vsel %vm228, %v223, 0
    %232 = vmatprep.subr.mxu0 0.0
    %233 = vmatpush1.msra.mxu0 0.0
    %234 = vmatprep.subr.mxu0 0.0
    %235 = vmatpush1.msra.mxu0 0.0
    %236 = vmatprep.subr.mxu0 0.0
    %237 = vmatpush1.msra.mxu0 0.0
    %238 = vmatprep.subr.mxu0 0.0
    %239 = vmatpush1.msra.mxu0 0.0
    %240 = vmatprep.subr.mxu0 0.0
    %241 = vmatpush1.msra.mxu0 0.0
    %242 = vmatprep.subr.mxu0 0.0
    %243 = vmatpush1.msra.mxu0 0.0
    %244 = vmatprep.subr.mxu0 0.0
    %245 = vmatpush1.msra.mxu0 0.0
    %246 = vmatprep.subr.mxu0 0.0
    %247 = vmatpush1.msra.mxu0 0.0
    %248 = vmatprep.subr.mxu0 0.0
    %249 = vmatpush1.msra.mxu0 0.0
    %250 = vmatprep.subr.mxu0 0.0
    %251 = vmatpush1.msra.mxu0 0.0
    %252 = vmatprep.subr.mxu0 0.0
    %253 = vmatpush1.msra.mxu0 0.0
    %254 = vmatprep.subr.mxu0 0.0
    %255 = vmatpush1.msra.mxu0 0.0
    %256 = vmatprep.subr.mxu0 0.0
    %257 = vmatpush1.msra.mxu0 0.0
    %258 = vmatprep.subr.mxu0 0.0
    %259 = vmatpush1.msra.mxu0 0.0
    %260 = vmatprep.subr.mxu0 0.0
    %261 = vmatpush1.msra.mxu0 0.0
    %262 = vmatprep.subr.mxu0 0.0
    %263 = vmatpush1.msra.mxu0 %v230
    %264 = vmatprep.subr.mxu0 0.0
    %265 = vmatpush2.msra.mxu0 0.0
    %266 = vmatprep.subr.mxu0 0.0
    %267 = vmatpush2.msra.mxu0 0.0
    %268 = vmatprep.subr.mxu0 0.0
    %269 = vmatpush2.msra.mxu0 0.0
    %270 = vmatprep.subr.mxu0 0.0
    %271 = vmatpush2.msra.mxu0 0.0
    %272 = vmatprep.subr.mxu0 0.0
    %273 = vmatpush2.msra.mxu0 0.0
    %274 = vmatprep.subr.mxu0 0.0
    %275 = vmatpush2.msra.mxu0 0.0
    %276 = vmatprep.subr.mxu0 0.0
    %277 = vmatpush2.msra.mxu0 0.0
    %278 = vmatprep.subr.mxu0 0.0
    %279 = vmatpush2.msra.mxu0 0.0
    %280 = vmatprep.subr.mxu0 0.0
    %281 = vmatpush2.msra.mxu0 0.0
    %282 = vmatprep.subr.mxu0 0.0
    %283 = vmatpush2.msra.mxu0 0.0
    %284 = vmatprep.subr.mxu0 0.0
    %285 = vmatpush2.msra.mxu0 0.0
    %286 = vmatprep.subr.mxu0 0.0
    %287 = vmatpush2.msra.mxu0 0.0
    %288 = vmatprep.subr.mxu0 0.0
    %289 = vmatpush2.msra.mxu0 0.0
    %290 = vmatprep.subr.mxu0 0.0
    %291 = vmatpush2.msra.mxu0 0.0
    %292 = vmatprep.subr.mxu0 0.0
    %293 = vmatpush2.msra.mxu0 0.0
    %294 = vmatprep.subr.mxu0 0.0
    %295 = vmatpush2.msra.mxu0 0.0
    %296 = vmatprep.mubr.f32.mxu0 0.0
    %297 = vmatmul.mubr.f32.gmra.mxu0 %v226
    %v298 = vpop.f32.mrf.mxu0
    %v299 = vadd.f32 0.0, %v298
    %v300 = vpop.f32.mrf.mxu0
    %301 = vdwg.mxu0
    %v302 = vadd.f32 %v220, %v299
    %v303 = vld [vmem:[%s9] sm:$0x1]
    %v304 = vlaneseq
    %v305 = vshrl.u32 %v304, 7
    %v306 = vsub.s32 0, %v305
    %v307 = vrot.slane %v303, %v306
    %v308 = vadd.f32 %v302, %v307
    %v309 = vlaneseq
    %v310 = vand.u32 %v309, 127
    %vm311 = vcmp.lt.s32.totalorder %v310, 64
    %v312 = vmax.f32 %v308, 0.0
    %v313 = vtanh.pop %v308
    %v314 = vsel %vm311, %v312, %v313
    %v315 = vld [vmem:[#allocation2] sm:$0xff]
    %v316 = vld [vmem:[#allocation2 + $0x8] sm:$0xff]
    %v317 = vld [vmem:[#allocation2 + $0x10] sm:$0xff]
    %v318 = vld [vmem:[#allocation2 + $0x18] sm:$0xff]
    %v319 = vld [vmem:[#allocation2 + $0x20] sm:$0xff]
    %v320 = vld [vmem:[#allocation2 + $0x28] sm:$0xff]
    %v321 = vld [vmem:[#allocation2 + $0x30] sm:$0xff]
    %v322 = vld [vmem:[#allocation2 + $0x38] sm:$0xff]
    %v323 = vld [vmem:[#allocation2 + $0x40] sm:$0xff]
    %v324 = vld [vmem:[#allocation2 + $0x48] sm:$0xff]
    %v325 = vld [vmem:[#allocation2 + $0x50] sm:$0xff]
    %v326 = vld [vmem:[#allocation2 + $0x58] sm:$0xff]
    %v327 = vld [vmem:[%s9 + $0x1] sm:$0x1]
    %v328 = vlaneseq
    %v329 = vshrl.u32 %v328, 7
    %v330 = vsub.s32 0, %v329
    %v331 = vrot.slane %v327, %v330
    %vm332 = vcmask 785408
    %v334 = vsel %vm332, %v314, 0
    %336 = vmatprep.subr.mxu0 0.0
    %337 = vmatpush1.msra.mxu0 0.0
    %338 = vmatprep.subr.mxu0 0.0
    %339 = vmatpush1.msra.mxu0 0.0
    %340 = vmatprep.subr.mxu0 0.0
    %341 = vmatpush1.msra.mxu0 0.0
    %342 = vmatprep.subr.mxu0 0.0
    %343 = vmatpush1.msra.mxu0 0.0
    %344 = vmatprep.subr.mxu0 0.0
    %345 = vmatpush1.msra.mxu0 %v326
    %346 = vmatprep.subr.mxu0 0.0
    %347 = vmatpush1.msra.mxu0 %v325
    %348 = vmatprep.subr.mxu0 0.0
    %349 = vmatpush1.msra.mxu0 %v324
    %350 = vmatprep.subr.mxu0 0.0
    %351 = vmatpush1.msra.mxu0 %v323
    %352 = vmatprep.subr.mxu0 0.0
    %353 = vmatpush1.msra.mxu0 %v322
    %354 = vmatprep.subr.mxu0 0.0
    %355 = vmatpush1.msra.mxu0 %v321
    %356 = vmatprep.subr.mxu0 0.0
    %357 = vmatpush1.msra.mxu0 %v320
    %358 = vmatprep.subr.mxu0 0.0
    %359 = vmatpush1.msra.mxu0 %v319
    %360 = vmatprep.subr.mxu0 0.0
    %361 = vmatpush1.msra.mxu0 %v318
    %362 = vmatprep.subr.mxu0 0.0
    %363 = vmatpush1.msra.mxu0 %v317
    %364 = vmatprep.subr.mxu0 0.0
    %365 = vmatpush1.msra.mxu0 %v316
    %366 = vmatprep.subr.mxu0 0.0
    %367 = vmatpush1.msra.mxu0 %v315
    %368 = vmatprep.subr.mxu0 0.0
    %369 = vmatpush2.msra.mxu0 0.0
    %370 = vmatprep.subr.mxu0 0.0
    %371 = vmatpush2.msra.mxu0 0.0
    %372 = vmatprep.subr.mxu0 0.0
    %373 = vmatpush2.msra.mxu0 0.0
    %374 = vmatprep.subr.mxu0 0.0
    %375 = vmatpush2.msra.mxu0 0.0
    %376 = vmatprep.subr.mxu0 0.0
    %377 = vmatpush2.msra.mxu0 0.0
    %378 = vmatprep.subr.mxu0 0.0
    %379 = vmatpush2.msra.mxu0 0.0
    %380 = vmatprep.subr.mxu0 0.0
    %381 = vmatpush2.msra.mxu0 0.0
    %382 = vmatprep.subr.mxu0 0.0
    %383 = vmatpush2.msra.mxu0 0.0
    %384 = vmatprep.subr.mxu0 0.0
    %385 = vmatpush2.msra.mxu0 0.0
    %386 = vmatprep.subr.mxu0 0.0
    %387 = vmatpush2.msra.mxu0 0.0
    %388 = vmatprep.subr.mxu0 0.0
    %389 = vmatpush2.msra.mxu0 0.0
    %390 = vmatprep.subr.mxu0 0.0
    %391 = vmatpush2.msra.mxu0 0.0
    %392 = vmatprep.subr.mxu0 0.0
    %393 = vmatpush2.msra.mxu0 0.0
    %394 = vmatprep.subr.mxu0 0.0
    %395 = vmatpush2.msra.mxu0 0.0
    %396 = vmatprep.subr.mxu0 0.0
    %397 = vmatpush2.msra.mxu0 0.0
    %398 = vmatprep.subr.mxu0 0.0
    %399 = vmatpush2.msra.mxu0 0.0
    %400 = vmatprep.mubr.f32.mxu0 0.0
    %401 = vmatmul.mubr.f32.gmra.mxu0 %v334
    %v402 = vpop.f32.mrf.mxu0
    %v403 = vadd.f32 %v331, %v402
    %v404 = vpop.f32.mrf.mxu0
    %405 = vdwg.mxu0
    %v406 = vmax.f32 %v403, 0.0
    %v407 = vtanh.pop %v403
    %v408 = vsel %vm311, %v406, %v407
    %v409 = vld [vmem:[#allocation5] sm:$0xff]
    %v410 = vld [vmem:[#allocation5 + $0x8] sm:$0xff]
    %v411 = vld [vmem:[#allocation5 + $0x10] sm:$0xff]
    %v412 = vld [vmem:[#allocation5 + $0x18] sm:$0xff]
    %v413 = vld [vmem:[%s9 + $0x2] sm:$0x1]
    %v414 = vlaneseq
    %v415 = vshrl.u32 %v414, 7
    %v416 = vsub.s32 0, %v415
    %v417 = vrot.slane %v413, %v416
    %vm418 = vcmask 261120
    %v420 = vsel %vm418, %v408, 0
    %422 = vmatprep.subr.mxu0 0.0
    %423 = vmatpush1.msra.mxu0 0.0
    %424 = vmatprep.subr.mxu0 0.0
    %425 = vmatpush1.msra.mxu0 0.0
    %426 = vmatprep.subr.mxu0 0.0
    %427 = vmatpush1.msra.mxu0 0.0
    %428 = vmatprep.subr.mxu0 0.0
    %429 = vmatpush1.msra.mxu0 0.0
    %430 = vmatprep.subr.mxu0 0.0
    %431 = vmatpush1.msra.mxu0 0.0
    %432 = vmatprep.subr.mxu0 0.0
    %433 = vmatpush1.msra.mxu0 0.0
    %434 = vmatprep.subr.mxu0 0.0
    %435 = vmatpush1.msra.mxu0 0.0
    %436 = vmatprep.subr.mxu0 0.0
    %437 = vmatpush1.msra.mxu0 0.0
    %438 = vmatprep.subr.mxu0 0.0
    %439 = vmatpush1.msra.mxu0 0.0
    %440 = vmatprep.subr.mxu0 0.0
    %441 = vmatpush1.msra.mxu0 0.0
    %442 = vmatprep.subr.mxu0 0.0
    %443 = vmatpush1.msra.mxu0 0.0
    %444 = vmatprep.subr.mxu0 0.0
    %445 = vmatpush1.msra.mxu0 0.0
    %446 = vmatprep.subr.mxu0 0.0
    %447 = vmatpush1.msra.mxu0 %v412
    %448 = vmatprep.subr.mxu0 0.0
    %449 = vmatpush1.msra.mxu0 %v411
    %450 = vmatprep.subr.mxu0 0.0
    %451 = vmatpush1.msra.mxu0 %v410
    %452 = vmatprep.subr.mxu0 0.0
    %453 = vmatpush1.msra.mxu0 %v409
    %454 = vmatprep.subr.mxu0 0.0
    %455 = vmatpush2.msra.mxu0 0.0
    %456 = vmatprep.subr.mxu0 0.0
    %457 = vmatpush2.msra.mxu0 0.0
    %458 = vmatprep.subr.mxu0 0.0
    %459 = vmatpush2.msra.mxu0 0.0
    %460 = vmatprep.subr.mxu0 0.0
    %461 = vmatpush2.msra.mxu0 0.0
    %462 = vmatprep.subr.mxu0 0.0
    %463 = vmatpush2.msra.mxu0 0.0
    %464 = vmatprep.subr.mxu0 0.0
    %465 = vmatpush2.msra.mxu0 0.0
    %466 = vmatprep.subr.mxu0 0.0
    %467 = vmatpush2.msra.mxu0 0.0
    %468 = vmatprep.subr.mxu0 0.0
    %469 = vmatpush2.msra.mxu0 0.0
    %470 = vmatprep.subr.mxu0 0.0
    %471 = vmatpush2.msra.mxu0 0.0
    %472 = vmatprep.subr.mxu0 0.0
    %473 = vmatpush2.msra.mxu0 0.0
    %474 = vmatprep.subr.mxu0 0.0
    %475 = vmatpush2.msra.mxu0 0.0
    %476 = vmatprep.subr.mxu0 0.0
    %477 = vmatpush2.msra.mxu0 0.0
    %478 = vmatprep.subr.mxu0 0.0
    %479 = vmatpush2.msra.mxu0 0.0
    %480 = vmatprep.subr.mxu0 0.0
    %481 = vmatpush2.msra.mxu0 0.0
    %482 = vmatprep.subr.mxu0 0.0
    %483 = vmatpush2.msra.mxu0 0.0
    %484 = vmatprep.subr.mxu0 0.0
    %485 = vmatpush2.msra.mxu0 0.0
    %486 = vmatprep.mubr.f32.mxu0 0.0
    %487 = vmatmul.mubr.f32.gmra.mxu0 %v420
    %v488 = vpop.f32.mrf.mxu0
    %v489 = vadd.f32 %v417, %v488
    %v490 = vpop.f32.mrf.mxu0
    %491 = vdwg.mxu0
    %v492 = vmax.f32 %v489, 0.0
    %s493 = scalar_lea.vmem [#allocation5], 32
    %v494 = vld [vmem:[%s493] sm:$0xff]
    %v495 = vld [vmem:[%s493 + $0x8] sm:$0xff]
    %v496 = vld [vmem:[%s493 + $0x10] sm:$0xff]
    %v497 = vld [vmem:[%s493 + $0x18] sm:$0xff]
    %s498 = scalar_lea.vmem [#allocation5], 64
    %v499 = vld [vmem:[%s498] sm:$0xff]
    %v500 = vld [vmem:[%s498 + $0x8] sm:$0xff]
    %v501 = vld [vmem:[%s498 + $0x10] sm:$0xff]
    %v502 = vld [vmem:[%s498 + $0x18] sm:$0xff]
    %503 = vrot.lane.b32.xlu0 %v408, 96
    %v504 = vpop.permute.xlu0 %503
    %v505 = vsel %vm418, %v504, 0
    %507 = vmatprep.subr.mxu0 0.0
    %508 = vmatpush1.msra.mxu0 0.0
    %509 = vmatprep.subr.mxu0 0.0
    %510 = vmatpush1.msra.mxu0 0.0
    %511 = vmatprep.subr.mxu0 0.0
    %512 = vmatpush1.msra.mxu0 0.0
    %513 = vmatprep.subr.mxu0 0.0
    %514 = vmatpush1.msra.mxu0 0.0
    %515 = vmatprep.subr.mxu0 0.0
    %516 = vmatpush1.msra.mxu0 0.0
    %517 = vmatprep.subr.mxu0 0.0
    %518 = vmatpush1.msra.mxu0 0.0
    %519 = vmatprep.subr.mxu0 0.0
    %520 = vmatpush1.msra.mxu0 0.0
    %521 = vmatprep.subr.mxu0 0.0
    %522 = vmatpush1.msra.mxu0 0.0
    %523 = vmatprep.subr.mxu0 0.0
    %524 = vmatpush1.msra.mxu0 0.0
    %525 = vmatprep.subr.mxu0 0.0
    %526 = vmatpush1.msra.mxu0 0.0
    %527 = vmatprep.subr.mxu0 0.0
    %528 = vmatpush1.msra.mxu0 0.0
    %529 = vmatprep.subr.mxu0 0.0
    %530 = vmatpush1.msra.mxu0 0.0
    %531 = vmatprep.subr.mxu0 0.0
    %532 = vmatpush1.msra.mxu0 %v502
    %533 = vmatprep.subr.mxu0 0.0
    %534 = vmatpush1.msra.mxu0 %v501
    %535 = vmatprep.subr.mxu0 0.0
    %536 = vmatpush1.msra.mxu0 %v500
    %537 = vmatprep.subr.mxu0 0.0
    %538 = vmatpush1.msra.mxu0 %v499
    %539 = vmatprep.subr.mxu0 0.0
    %540 = vmatpush2.msra.mxu0 0.0
    %541 = vmatprep.subr.mxu0 0.0
    %542 = vmatpush2.msra.mxu0 0.0
    %543 = vmatprep.subr.mxu0 0.0
    %544 = vmatpush2.msra.mxu0 0.0
    %545 = vmatprep.subr.mxu0 0.0
    %546 = vmatpush2.msra.mxu0 0.0
    %547 = vmatprep.subr.mxu0 0.0
    %548 = vmatpush2.msra.mxu0 0.0
    %549 = vmatprep.subr.mxu0 0.0
    %550 = vmatpush2.msra.mxu0 0.0
    %551 = vmatprep.subr.mxu0 0.0
    %552 = vmatpush2.msra.mxu0 0.0
    %553 = vmatprep.subr.mxu0 0.0
    %554 = vmatpush2.msra.mxu0 0.0
    %555 = vmatprep.subr.mxu0 0.0
    %556 = vmatpush2.msra.mxu0 0.0
    %557 = vmatprep.subr.mxu0 0.0
    %558 = vmatpush2.msra.mxu0 0.0
    %559 = vmatprep.subr.mxu0 0.0
    %560 = vmatpush2.msra.mxu0 0.0
    %561 = vmatprep.subr.mxu0 0.0
    %562 = vmatpush2.msra.mxu0 0.0
    %563 = vmatprep.subr.mxu0 0.0
    %564 = vmatpush2.msra.mxu0 0.0
    %565 = vmatprep.subr.mxu0 0.0
    %566 = vmatpush2.msra.mxu0 0.0
    %567 = vmatprep.subr.mxu0 0.0
    %568 = vmatpush2.msra.mxu0 0.0
    %569 = vmatprep.subr.mxu0 0.0
    %570 = vmatpush2.msra.mxu0 0.0
    %571 = vmatprep.mubr.f32.mxu0 0.0
    %572 = vmatmul.mubr.f32.gmra.mxu0 %v505
    %v573 = vpop.f32.mrf.mxu0
    %v574 = vadd.f32 0.0, %v573
    %v575 = vpop.f32.mrf.mxu0
    %576 = vdwg.mxu0
    %v578 = vsel %vm418, %v492, 0
    %580 = vmatprep.subr.mxu0 0.0
    %581 = vmatpush1.msra.mxu0 0.0
    %582 = vmatprep.subr.mxu0 0.0
    %583 = vmatpush1.msra.mxu0 0.0
    %584 = vmatprep.subr.mxu0 0.0
    %585 = vmatpush1.msra.mxu0 0.0
    %586 = vmatprep.subr.mxu0 0.0
    %587 = vmatpush1.msra.mxu0 0.0
    %588 = vmatprep.subr.mxu0 0.0
    %589 = vmatpush1.msra.mxu0 0.0
    %590 = vmatprep.subr.mxu0 0.0
    %591 = vmatpush1.msra.mxu0 0.0
    %592 = vmatprep.subr.mxu0 0.0
    %593 = vmatpush1.msra.mxu0 0.0
    %594 = vmatprep.subr.mxu0 0.0
    %595 = vmatpush1.msra.mxu0 0.0
    %596 = vmatprep.subr.mxu0 0.0
    %597 = vmatpush1.msra.mxu0 0.0
    %598 = vmatprep.subr.mxu0 0.0
    %599 = vmatpush1.msra.mxu0 0.0
    %600 = vmatprep.subr.mxu0 0.0
    %601 = vmatpush1.msra.mxu0 0.0
    %602 = vmatprep.subr.mxu0 0.0
    %603 = vmatpush1.msra.mxu0 0.0
    %604 = vmatprep.subr.mxu0 0.0
    %605 = vmatpush1.msra.mxu0 %v497
    %606 = vmatprep.subr.mxu0 0.0
    %607 = vmatpush1.msra.mxu0 %v496
    %608 = vmatprep.subr.mxu0 0.0
    %609 = vmatpush1.msra.mxu0 %v495
    %610 = vmatprep.subr.mxu0 0.0
    %611 = vmatpush1.msra.mxu0 %v494
    %612 = vmatprep.subr.mxu0 0.0
    %613 = vmatpush2.msra.mxu0 0.0
    %614 = vmatprep.subr.mxu0 0.0
    %615 = vmatpush2.msra.mxu0 0.0
    %616 = vmatprep.subr.mxu0 0.0
    %617 = vmatpush2.msra.mxu0 0.0
    %618 = vmatprep.subr.mxu0 0.0
    %619 = vmatpush2.msra.mxu0 0.0
    %620 = vmatprep.subr.mxu0 0.0
    %621 = vmatpush2.msra.mxu0 0.0
    %622 = vmatprep.subr.mxu0 0.0
    %623 = vmatpush2.msra.mxu0 0.0
    %624 = vmatprep.subr.mxu0 0.0
    %625 = vmatpush2.msra.mxu0 0.0
    %626 = vmatprep.subr.mxu0 0.0
    %627 = vmatpush2.msra.mxu0 0.0
    %628 = vmatprep.subr.mxu0 0.0
    %629 = vmatpush2.msra.mxu0 0.0
    %630 = vmatprep.subr.mxu0 0.0
    %631 = vmatpush2.msra.mxu0 0.0
    %632 = vmatprep.subr.mxu0 0.0
    %633 = vmatpush2.msra.mxu0 0.0
    %634 = vmatprep.subr.mxu0 0.0
    %635 = vmatpush2.msra.mxu0 0.0
    %636 = vmatprep.subr.mxu0 0.0
    %637 = vmatpush2.msra.mxu0 0.0
    %638 = vmatprep.subr.mxu0 0.0
    %639 = vmatpush2.msra.mxu0 0.0
    %640 = vmatprep.subr.mxu0 0.0
    %641 = vmatpush2.msra.mxu0 0.0
    %642 = vmatprep.subr.mxu0 0.0
    %643 = vmatpush2.msra.mxu0 0.0
    %644 = vmatprep.mubr.f32.mxu0 0.0
    %645 = vmatmul.mubr.f32.gmra.mxu0 %v578
    %v646 = vpop.f32.mrf.mxu0
    %v647 = vadd.f32 %v574, %v646
    %v648 = vpop.f32.mrf.mxu0
    %649 = vdwg.mxu0
    %v650 = vld [vmem:[%s9 + $0x3] sm:$0x1]
    %v651 = vlaneseq
    %v652 = vshrl.u32 %v651, 7
    %v653 = vsub.s32 0, %v652
    %v654 = vrot.slane %v650, %v653
    %v655 = vadd.f32 %v647, %v654
    %v656 = vmax.f32 %v655, 0.0
    %657 = vrot.lane.b32.xlu0 %v408, 64
    %v658 = vpop.permute.xlu0 %657
    %v660 = vmul.f32 %v656, %v658
    %s661 = scalar_lea.vmem [#allocation5], 96
    %v662 = vld [vmem:[%s661] sm:$0xff]
    %v663 = vld [vmem:[%s661 + $0x8] sm:$0xff]
    %v664 = vld [vmem:[%s661 + $0x10] sm:$0xff]
    %v665 = vld [vmem:[%s661 + $0x18] sm:$0xff]
    %v666 = vld [vmem:[%s9 + $0x4] sm:$0x1]
    %v667 = vlaneseq
    %v668 = vshrl.u32 %v667, 7
    %v669 = vsub.s32 0, %v668
    %v670 = vrot.slane %v666, %v669
    %v672 = vsel %vm418, %v660, 0
    %674 = vmatprep.subr.mxu0 0.0
    %675 = vmatpush1.msra.mxu0 0.0
    %676 = vmatprep.subr.mxu0 0.0
    %677 = vmatpush1.msra.mxu0 0.0
    %678 = vmatprep.subr.mxu0 0.0
    %679 = vmatpush1.msra.mxu0 0.0
    %680 = vmatprep.subr.mxu0 0.0
    %681 = vmatpush1.msra.mxu0 0.0
    %682 = vmatprep.subr.mxu0 0.0
    %683 = vmatpush1.msra.mxu0 0.0
    %684 = vmatprep.subr.mxu0 0.0
    %685 = vmatpush1.msra.mxu0 0.0
    %686 = vmatprep.subr.mxu0 0.0
    %687 = vmatpush1.msra.mxu0 0.0
    %688 = vmatprep.subr.mxu0 0.0
    %689 = vmatpush1.msra.mxu0 0.0
    %690 = vmatprep.subr.mxu0 0.0
    %691 = vmatpush1.msra.mxu0 0.0
    %692 = vmatprep.subr.mxu0 0.0
    %693 = vmatpush1.msra.mxu0 0.0
    %694 = vmatprep.subr.mxu0 0.0
    %695 = vmatpush1.msra.mxu0 0.0
    %696 = vmatprep.subr.mxu0 0.0
    %697 = vmatpush1.msra.mxu0 0.0
    %698 = vmatprep.subr.mxu0 0.0
    %699 = vmatpush1.msra.mxu0 %v665
    %700 = vmatprep.subr.mxu0 0.0
    %701 = vmatpush1.msra.mxu0 %v664
    %702 = vmatprep.subr.mxu0 0.0
    %703 = vmatpush1.msra.mxu0 %v663
    %704 = vmatprep.subr.mxu0 0.0
    %705 = vmatpush1.msra.mxu0 %v662
    %706 = vmatprep.subr.mxu0 0.0
    %707 = vmatpush2.msra.mxu0 0.0
    %708 = vmatprep.subr.mxu0 0.0
    %709 = vmatpush2.msra.mxu0 0.0
    %710 = vmatprep.subr.mxu0 0.0
    %711 = vmatpush2.msra.mxu0 0.0
    %712 = vmatprep.subr.mxu0 0.0
    %713 = vmatpush2.msra.mxu0 0.0
    %714 = vmatprep.subr.mxu0 0.0
    %715 = vmatpush2.msra.mxu0 0.0
    %716 = vmatprep.subr.mxu0 0.0
    %717 = vmatpush2.msra.mxu0 0.0
    %718 = vmatprep.subr.mxu0 0.0
    %719 = vmatpush2.msra.mxu0 0.0
    %720 = vmatprep.subr.mxu0 0.0
    %721 = vmatpush2.msra.mxu0 0.0
    %722 = vmatprep.subr.mxu0 0.0
    %723 = vmatpush2.msra.mxu0 0.0
    %724 = vmatprep.subr.mxu0 0.0
    %725 = vmatpush2.msra.mxu0 0.0
    %726 = vmatprep.subr.mxu0 0.0
    %727 = vmatpush2.msra.mxu0 0.0
    %728 = vmatprep.subr.mxu0 0.0
    %729 = vmatpush2.msra.mxu0 0.0
    %730 = vmatprep.subr.mxu0 0.0
    %731 = vmatpush2.msra.mxu0 0.0
    %732 = vmatprep.subr.mxu0 0.0
    %733 = vmatpush2.msra.mxu0 0.0
    %734 = vmatprep.subr.mxu0 0.0
    %735 = vmatpush2.msra.mxu0 0.0
    %736 = vmatprep.subr.mxu0 0.0
    %737 = vmatpush2.msra.mxu0 0.0
    %738 = vmatprep.mubr.f32.mxu0 0.0
    %739 = vmatmul.mubr.f32.gmra.mxu0 %v672
    %v740 = vpop.f32.mrf.mxu0
    %v741 = vadd.f32 %v670, %v740
    %v742 = vpop.f32.mrf.mxu0
    %743 = vdwg.mxu0
    %v744 = vmax.f32 %v741, 0.0
    %v745 = vmul.f32 %v744, %v658
    %s746 = scalar_lea.vmem [#allocation5], 128
    %v747 = vld [vmem:[%s746] sm:$0xff]
    %v748 = vld [vmem:[%s746 + $0x8] sm:$0xff]
    %v749 = vld [vmem:[%s746 + $0x10] sm:$0xff]
    %v750 = vld [vmem:[%s746 + $0x18] sm:$0xff]
    %v751 = vld [vmem:[%s9 + $0x5] sm:$0x1]
    %v752 = vlaneseq
    %v753 = vshrl.u32 %v752, 7
    %v754 = vsub.s32 0, %v753
    %v755 = vrot.slane %v751, %v754
    %v757 = vsel %vm418, %v745, 0
    %759 = vmatprep.subr.mxu0 0.0
    %760 = vmatpush1.msra.mxu0 0.0
    %761 = vmatprep.subr.mxu0 0.0
    %762 = vmatpush1.msra.mxu0 0.0
    %763 = vmatprep.subr.mxu0 0.0
    %764 = vmatpush1.msra.mxu0 0.0
    %765 = vmatprep.subr.mxu0 0.0
    %766 = vmatpush1.msra.mxu0 0.0
    %767 = vmatprep.subr.mxu0 0.0
    %768 = vmatpush1.msra.mxu0 0.0
    %769 = vmatprep.subr.mxu0 0.0
    %770 = vmatpush1.msra.mxu0 0.0
    %771 = vmatprep.subr.mxu0 0.0
    %772 = vmatpush1.msra.mxu0 0.0
    %773 = vmatprep.subr.mxu0 0.0
    %774 = vmatpush1.msra.mxu0 0.0
    %775 = vmatprep.subr.mxu0 0.0
    %776 = vmatpush1.msra.mxu0 0.0
    %777 = vmatprep.subr.mxu0 0.0
    %778 = vmatpush1.msra.mxu0 0.0
    %779 = vmatprep.subr.mxu0 0.0
    %780 = vmatpush1.msra.mxu0 0.0
    %781 = vmatprep.subr.mxu0 0.0
    %782 = vmatpush1.msra.mxu0 0.0
    %783 = vmatprep.subr.mxu0 0.0
    %784 = vmatpush1.msra.mxu0 %v750
    %785 = vmatprep.subr.mxu0 0.0
    %786 = vmatpush1.msra.mxu0 %v749
    %787 = vmatprep.subr.mxu0 0.0
    %788 = vmatpush1.msra.mxu0 %v748
    %789 = vmatprep.subr.mxu0 0.0
    %790 = vmatpush1.msra.mxu0 %v747
    %791 = vmatprep.subr.mxu0 0.0
    %792 = vmatpush2.msra.mxu0 0.0
    %793 = vmatprep.subr.mxu0 0.0
    %794 = vmatpush2.msra.mxu0 0.0
    %795 = vmatprep.subr.mxu0 0.0
    %796 = vmatpush2.msra.mxu0 0.0
    %797 = vmatprep.subr.mxu0 0.0
    %798 = vmatpush2.msra.mxu0 0.0
    %799 = vmatprep.subr.mxu0 0.0
    %800 = vmatpush2.msra.mxu0 0.0
    %801 = vmatprep.subr.mxu0 0.0
    %802 = vmatpush2.msra.mxu0 0.0
    %803 = vmatprep.subr.mxu0 0.0
    %804 = vmatpush2.msra.mxu0 0.0
    %805 = vmatprep.subr.mxu0 0.0
    %806 = vmatpush2.msra.mxu0 0.0
    %807 = vmatprep.subr.mxu0 0.0
    %808 = vmatpush2.msra.mxu0 0.0
    %809 = vmatprep.subr.mxu0 0.0
    %810 = vmatpush2.msra.mxu0 0.0
    %811 = vmatprep.subr.mxu0 0.0
    %812 = vmatpush2.msra.mxu0 0.0
    %813 = vmatprep.subr.mxu0 0.0
    %814 = vmatpush2.msra.mxu0 0.0
    %815 = vmatprep.subr.mxu0 0.0
    %816 = vmatpush2.msra.mxu0 0.0
    %817 = vmatprep.subr.mxu0 0.0
    %818 = vmatpush2.msra.mxu0 0.0
    %819 = vmatprep.subr.mxu0 0.0
    %820 = vmatpush2.msra.mxu0 0.0
    %821 = vmatprep.subr.mxu0 0.0
    %822 = vmatpush2.msra.mxu0 0.0
    %823 = vmatprep.mubr.f32.mxu0 0.0
    %824 = vmatmul.mubr.f32.gmra.mxu0 %v757
    %v825 = vpop.f32.mrf.mxu0
    %v826 = vadd.f32 %v755, %v825
    %v827 = vpop.f32.mrf.mxu0
    %828 = vdwg.mxu0
    %v829 = vmax.f32 %v826, 0.0
    %v830 = vmul.f32 %v829, %v658
    %v831 = vld [vmem:[%s8] sm:$0xff]
    %v832 = vld [vmem:[%s8 + $0x8] sm:$0xff]
    %v833 = vld [vmem:[%s8 + $0x10] sm:$0xff]
    %v834 = vld [vmem:[%s8 + $0x18] sm:$0xff]
    %v835 = vld [vmem:[%s9 + $0x6] sm:$0x1]
    %v836 = vlaneseq
    %v837 = vshrl.u32 %v836, 7
    %v838 = vsub.s32 0, %v837
    %v839 = vrot.slane %v835, %v838
    %v841 = vsel %vm418, %v830, 0
    %843 = vmatprep.subr.mxu0 0.0
    %844 = vmatpush1.msra.mxu0 0.0
    %845 = vmatprep.subr.mxu0 0.0
    %846 = vmatpush1.msra.mxu0 0.0
    %847 = vmatprep.subr.mxu0 0.0
    %848 = vmatpush1.msra.mxu0 0.0
    %849 = vmatprep.subr.mxu0 0.0
    %850 = vmatpush1.msra.mxu0 0.0
    %851 = vmatprep.subr.mxu0 0.0
    %852 = vmatpush1.msra.mxu0 0.0
    %853 = vmatprep.subr.mxu0 0.0
    %854 = vmatpush1.msra.mxu0 0.0
    %855 = vmatprep.subr.mxu0 0.0
    %856 = vmatpush1.msra.mxu0 0.0
    %857 = vmatprep.subr.mxu0 0.0
    %858 = vmatpush1.msra.mxu0 0.0
    %859 = vmatprep.subr.mxu0 0.0
    %860 = vmatpush1.msra.mxu0 0.0
    %861 = vmatprep.subr.mxu0 0.0
    %862 = vmatpush1.msra.mxu0 0.0
    %863 = vmatprep.subr.mxu0 0.0
    %864 = vmatpush1.msra.mxu0 0.0
    %865 = vmatprep.subr.mxu0 0.0
    %866 = vmatpush1.msra.mxu0 0.0
    %867 = vmatprep.subr.mxu0 0.0
    %868 = vmatpush1.msra.mxu0 %v834
    %869 = vmatprep.subr.mxu0 0.0
    %870 = vmatpush1.msra.mxu0 %v833
    %871 = vmatprep.subr.mxu0 0.0
    %872 = vmatpush1.msra.mxu0 %v832
    %873 = vmatprep.subr.mxu0 0.0
    %874 = vmatpush1.msra.mxu0 %v831
    %875 = vmatprep.subr.mxu0 0.0
    %876 = vmatpush2.msra.mxu0 0.0
    %877 = vmatprep.subr.mxu0 0.0
    %878 = vmatpush2.msra.mxu0 0.0
    %879 = vmatprep.subr.mxu0 0.0
    %880 = vmatpush2.msra.mxu0 0.0
    %881 = vmatprep.subr.mxu0 0.0
    %882 = vmatpush2.msra.mxu0 0.0
    %883 = vmatprep.subr.mxu0 0.0
    %884 = vmatpush2.msra.mxu0 0.0
    %885 = vmatprep.subr.mxu0 0.0
    %886 = vmatpush2.msra.mxu0 0.0
    %887 = vmatprep.subr.mxu0 0.0
    %888 = vmatpush2.msra.mxu0 0.0
    %889 = vmatprep.subr.mxu0 0.0
    %890 = vmatpush2.msra.mxu0 0.0
    %891 = vmatprep.subr.mxu0 0.0
    %892 = vmatpush2.msra.mxu0 0.0
    %893 = vmatprep.subr.mxu0 0.0
    %894 = vmatpush2.msra.mxu0 0.0
    %895 = vmatprep.subr.mxu0 0.0
    %896 = vmatpush2.msra.mxu0 0.0
    %897 = vmatprep.subr.mxu0 0.0
    %898 = vmatpush2.msra.mxu0 0.0
    %899 = vmatprep.subr.mxu0 0.0
    %900 = vmatpush2.msra.mxu0 0.0
    %901 = vmatprep.subr.mxu0 0.0
    %902 = vmatpush2.msra.mxu0 0.0
    %903 = vmatprep.subr.mxu0 0.0
    %904 = vmatpush2.msra.mxu0 0.0
    %905 = vmatprep.subr.mxu0 0.0
    %906 = vmatpush2.msra.mxu0 0.0
    %907 = vmatprep.mubr.f32.mxu0 0.0
    %908 = vmatmul.mubr.f32.gmra.mxu0 %v841
    %v909 = vpop.f32.mrf.mxu0
    %v910 = vadd.f32 %v839, %v909
    %v911 = vpop.f32.mrf.mxu0
    %912 = vdwg.mxu0
    %v913 = vadd.f32 %v910, %v64
    %914 = vst.msk [vmem:[#allocation7] sm:$0xff] %vm149, %v913
    // Predicated region
    $region50: #{tpu_custom_call.1} parent=1 // pred_check
      _
    $region51: #{tpu_custom_call.1} parent=1 // pred_check_branch
      %916 = sbr.rel (0) target = $region53
    $region52: #{tpu_custom_call.1} parent=1 // pred_region
      %s918 = ssub.s32 128, 128
      %919 = vsyncadd [#allocation4], %s918
      %s921 = sshll.u32 [#allocation7], 4
      %s922 = int_to_ptr.vmem [resolvable:$true] %s921
      %924 = dma.vmem_to_hbm [thread:$0]  %s922, 128, %s10, [#allocation4]
    $region53: #{tpu_custom_call.1} parent=1 // pred_fallthru
      _
    // Predicated region
    $region54: #{tpu_custom_call.1} parent=1 // pred_check
      _
    $region55: #{tpu_custom_call.1} parent=1 // pred_check_branch
      %926 = sbr.rel (0) target = $region57
    $region56: #{tpu_custom_call.1} parent=1 // pred_region
      %927 = dma.done [#allocation4], 128
    $region57: #{tpu_custom_call.1} parent=1 // pred_fallthru
      _
    %928 = vsyncpa [#allocation3], 1
    %929 = vsyncpa [#allocation6], 1
    %930 = vsyncpa [#allocation4], 1

</llo_original>
